<compile_context>
chip_gen: v5e
topology: v5e:2x2
jax: 0.10.0
libtpu: 0.0.40
codegen_flags: <defaults>
</compile_context>

<pallas_src>
import functools

import jax
import jax.numpy as jnp
from jax.experimental import pallas as pl
from jax.experimental.pallas import tpu as pltpu

LANES = 128  # lane-dense packed slab width


# ----------------------------------------------------------------------------
# Fused batched kernel: GAT encoder + decoder + discriminator, one graph/step
# ----------------------------------------------------------------------------

def fused_gat_kernel(emb_ref, adj_ref, wext_ref, packw_ref, packb_ref,
                     const_ref, out_ref, *, alpha, neg_slope, hid):
    emb = emb_ref[0]                                                     # (N, D)
    adj = adj_ref[0]                                                     # (N, N)
    wext = wext_ref[0]                                                   # (D, 128)
    packw = packw_ref[0]                                                 # (128, 128)
    packb = packb_ref[0]                                                 # (1, 128)
    w2_row = const_ref[0:1, :]                                           # (1, 128)
    b2_row = const_ref[1:2, :]                                           # (1, 128)
    keep_row = const_ref[2:3, :]                                         # (1, 128)
    dis_col = const_ref[3:4, :]                                          # (1, 128)

    # ---- GAT encoder ------------------------------------------------------
    # One lane-dense matmul: lanes [0:H]=h, lane H=f_src, lane H+1=f_dst.
    hf = jnp.dot(emb, wext, preferred_element_type=jnp.float32)          # (N, 128)
    f_src = hf[:, hid:hid + 1]                                           # (N, 1)
    f_dst = hf[:, hid + 1:hid + 2]                                       # (N, 1)
    e = f_src + f_dst.T                                                  # (N, N)
    e = jnp.where(e > 0, e, alpha * e)                                   # LeakyReLU(alpha)
    e = jnp.where(adj > 0, e, jnp.float32(-1e9))                         # mask non-edges
    e = e - jnp.max(e, axis=-1, keepdims=True)                           # stable softmax
    p = jnp.exp(e)
    attn = p * pl.reciprocal(jnp.sum(p, axis=-1, keepdims=True), approx=True)
    s = jnp.dot(attn, hf, preferred_element_type=jnp.float32)            # (N, 128)
    elu = jnp.where(s > 0, s, jnp.exp(s) - 1.0)                          # ELU (only lanes<H used)

    # ---- decoder + discriminator layer 1, one lane-dense pack matmul ------
    # pack_w rows >= H are zero, so the f/zero lanes of `elu` contribute nothing.
    # lanes: [enc(0:H) | re_emb(H:H+D) | d1_pre(H+D:H+D+DH) | 0]
    packed = (jnp.dot(elu, packw, preferred_element_type=jnp.float32)
              + packb)                                                    # (N, 128)

    # ---- discriminator layer 2: VPU LeakyReLU + masked lane reduction ------
    lrelu = jnp.where(packed > 0, packed, neg_slope * packed)            # in-slab LeakyReLU(0.2)
    d2 = jnp.sum(lrelu * w2_row + b2_row, axis=-1, keepdims=True)        # (N, 1) = d1@W2 + b2
    dis = 1.0 / (1.0 + jnp.exp(-d2))                                     # exact sigmoid

    # ---- lane-dense writeback: [enc | re_emb | dis | zeros] ----------------
    out_ref[0] = packed * keep_row + dis * dis_col                       # (N, 128)


# ----------------------------------------------------------------------------
# One-time trace-time parameter packing (hoisted out of the per-step path)
# ----------------------------------------------------------------------------

def _graph_pack(W, a_src, a_dst, dec_W, dec_b, dis_W1, dis_b1):
    d_in, hid = W.shape
    emb_dim = dec_W.shape[1]
    dh = dis_W1.shape[1]
    assert hid + 2 <= LANES
    assert hid + emb_dim + dh <= LANES, "packed slab does not fit 128 lanes"

    wext = jnp.zeros((d_in, LANES), jnp.float32)
    wext = wext.at[:, :hid].set(W)
    wext = wext.at[:, hid:hid + 1].set(W @ a_src)
    wext = wext.at[:, hid + 1:hid + 2].set(W @ a_dst)

    packw = jnp.zeros((LANES, LANES), jnp.float32)
    packw = packw.at[:hid, :hid].set(jnp.eye(hid, dtype=jnp.float32))
    packw = packw.at[:hid, hid:hid + emb_dim].set(dec_W)
    packw = packw.at[:hid, hid + emb_dim:hid + emb_dim + dh].set(dis_W1)

    packb = jnp.zeros((1, LANES), jnp.float32)
    packb = packb.at[:, hid:hid + emb_dim].set(dec_b.reshape(1, emb_dim))
    packb = packb.at[:, hid + emb_dim:hid + emb_dim + dh].set(dis_b1.reshape(1, dh))
    return wext, packw, packb


def pack_gat_params(params):
    """Pack weights once; reuse across forward steps (re-run only when params change)."""
    hid = params["src_W"].shape[1]
    emb_dim = params["src_dec_W"].shape[1]
    dh = params["dis_W1"].shape[1]

    src = _graph_pack(params["src_W"], params["src_a_src"], params["src_a_dst"],
                      params["src_dec_W"], params["src_dec_b"],
                      params["dis_W1"], params["dis_b1"])
    tgt = _graph_pack(params["tgt_W"], params["tgt_a_src"], params["tgt_a_dst"],
                      params["tgt_dec_W"], params["tgt_dec_b"],
                      params["dis_W1"], params["dis_b1"])

    consts = jnp.zeros((8, LANES), jnp.float32)
    consts = consts.at[0, hid + emb_dim:hid + emb_dim + dh].set(
        params["dis_W2"].reshape(dh))                                    # w2 row
    consts = consts.at[1, 0].set(params["dis_b2"].reshape(()))           # b2 (one lane)
    consts = consts.at[2, :hid + emb_dim].set(1.0)                       # keep mask
    consts = consts.at[3, hid + emb_dim].set(1.0)                        # dis one-hot column

    return {
        "hid": hid, "emb_dim": emb_dim,
        "w_ext": jnp.stack([src[0], tgt[0]]),       # (2, D, 128)
        "pack_w": jnp.stack([src[1], tgt[1]]),      # (2, 128, 128)
        "pack_b": jnp.stack([src[2], tgt[2]]),      # (2, 1, 128)
        "consts": consts,                           # (8, 128) shared, VMEM-resident
    }


# ----------------------------------------------------------------------------
# Full GATModel.forward — one batched pallas_call for both graphs
# ----------------------------------------------------------------------------

def gat_model_forward(packed_params, src_emb, src_adj, tgt_emb, tgt_adj, dico,
                      alpha, dis_smooth):
    del dis_smooth  # only used for the (unreturned) label tensor `y`
    n_src, d_in = src_emb.shape
    n_tgt, d_in_t = tgt_emb.shape
    assert d_in == d_in_t
    hid = packed_params["hid"]
    emb_dim = packed_params["emb_dim"]

    # Stack both graphs on a leading axis; zero-pad tgt rows up to n_max
    # (pad rows produce harmless uniform-attention junk that is sliced off).
    n_max = ((max(n_src, n_tgt) + 7) // 8) * 8
    pad_rows = lambda x: jnp.pad(x, ((0, n_max - x.shape[0]), (0, 0)))
    pad_adj = lambda a: jnp.pad(a, ((0, n_max - a.shape[0]), (0, n_max - a.shape[1])))
    emb = jnp.stack([pad_rows(src_emb), pad_rows(tgt_emb)])              # (2, n_max, D)
    adj = jnp.stack([pad_adj(src_adj), pad_adj(tgt_adj)])                # (2, n_max, n_max)

    kernel = functools.partial(fused_gat_kernel, alpha=alpha, neg_slope=0.2,
                               hid=hid)
    out = pl.pallas_call(
        kernel,
        out_shape=jax.ShapeDtypeStruct((2, n_max, LANES), jnp.float32),
        grid=(2,),
        in_specs=[
            pl.BlockSpec((1, n_max, d_in), lambda g: (g, 0, 0)),     # emb
            pl.BlockSpec((1, n_max, n_max), lambda g: (g, 0, 0)),    # adj
            pl.BlockSpec((1, d_in, LANES), lambda g: (g, 0, 0)),     # [W | W@a_src | W@a_dst]
            pl.BlockSpec((1, LANES, LANES), lambda g: (g, 0, 0)),    # [I | dec_W | dis_W1 | 0]
            pl.BlockSpec((1, 1, LANES), lambda g: (g, 0, 0)),        # packed bias
            pl.BlockSpec((8, LANES), lambda g: (0, 0)),              # shared consts (resident)
        ],
        out_specs=pl.BlockSpec((1, n_max, LANES), lambda g: (g, 0, 0)),
        compiler_params=pltpu.CompilerParams(
            dimension_semantics=("parallel",)),   # 2 independent graphs -> 2 TCs on v7x
    )(emb, adj, packed_params["w_ext"], packed_params["pack_w"],
      packed_params["pack_b"], packed_params["consts"])

    src_slab = out[0, :n_src]
    tgt_slab = out[1, :n_tgt]
    src_enc = src_slab[:, :hid]
    tgt_enc = tgt_slab[:, :hid]
    src_re = src_slab[:, hid:hid + emb_dim]
    tgt_re = tgt_slab[:, hid:hid + emb_dim]
    dis_out = jnp.concatenate([src_slab[:, hid + emb_dim],
                               tgt_slab[:, hid + emb_dim]], axis=0)      # (Nsrc+Ntgt,)
    # Dictionary row gathers (tiny; plain JAX glue).
    A1 = jnp.take(src_enc, dico[:, 0], axis=0)
    B1 = jnp.take(tgt_enc, dico[:, 1], axis=0)
    return src_enc, tgt_enc, dis_out, src_re, tgt_re, A1, B1


# ----------------------------------------------------------------------------
# Pure-JAX reference (for a loose correctness check)
# ----------------------------------------------------------------------------

def _ref_gat_encode(emb, adj, w, a_src, a_dst, alpha):
    h = emb @ w
    e = (h @ a_src) + (h @ a_dst).T
    e = jnp.where(e > 0, e, alpha * e)
    e = jnp.where(adj > 0, e, -1e9)
    attn = jax.nn.softmax(e, axis=-1)
    hp = attn @ h
    return jnp.where(hp > 0, hp, jnp.exp(hp) - 1.0)


def _ref_forward(params, src_emb, src_adj, tgt_emb, tgt_adj, dico, alpha):
    src_enc = _ref_gat_encode(src_emb, src_adj, params["src_W"],
                              params["src_a_src"], params["src_a_dst"], alpha)
    tgt_enc = _ref_gat_encode(tgt_emb, tgt_adj, params["tgt_W"],
                              params["tgt_a_src"], params["tgt_a_dst"], alpha)
    x = jnp.concatenate([src_enc, tgt_enc], axis=0)
    h1 = x @ params["dis_W1"] + params["dis_b1"]
    h1 = jnp.where(h1 > 0, h1, 0.2 * h1)
    dis = (1.0 / (1.0 + jnp.exp(-(h1 @ params["dis_W2"] + params["dis_b2"])))).reshape(-1)
    src_re = src_enc @ params["src_dec_W"] + params["src_dec_b"]
    tgt_re = tgt_enc @ params["tgt_dec_W"] + params["tgt_dec_b"]
    A1 = src_enc[dico[:, 0]]
    B1 = tgt_enc[dico[:, 1]]
    return src_enc, tgt_enc, dis, src_re, tgt_re, A1, B1


# ----------------------------------------------------------------------------
# Main
# ----------------------------------------------------------------------------

if __name__ == "__main__":
    SRC_VOCAB, TGT_VOCAB = 24, 16
    EMB_DIM, HID_DIM, DIS_HID = 32, 16, 32
    N_PAIRS = 8
    ALPHA, DIS_SMOOTH = 0.2, 0.1

    key = jax.random.PRNGKey(0)
    ks = jax.random.split(key, 16)

    src_emb = jax.random.normal(ks[0], (SRC_VOCAB, EMB_DIM), jnp.float32)
    tgt_emb = jax.random.normal(ks[1], (TGT_VOCAB, EMB_DIM), jnp.float32)
    src_adj = (jax.random.uniform(ks[2], (SRC_VOCAB, SRC_VOCAB)) > 0.6).astype(jnp.float32)
    src_adj = jnp.maximum(src_adj, jnp.eye(SRC_VOCAB, dtype=jnp.float32))
    tgt_adj = (jax.random.uniform(ks[3], (TGT_VOCAB, TGT_VOCAB)) > 0.6).astype(jnp.float32)
    tgt_adj = jnp.maximum(tgt_adj, jnp.eye(TGT_VOCAB, dtype=jnp.float32))
    dico = jnp.stack(
        [jax.random.randint(ks[4], (N_PAIRS,), 0, SRC_VOCAB),
         jax.random.randint(ks[5], (N_PAIRS,), 0, TGT_VOCAB)], axis=1)

    scale = 0.1
    params = {
        # GAT encoders
        "src_W": scale * jax.random.normal(ks[6], (EMB_DIM, HID_DIM), jnp.float32),
        "src_a_src": scale * jax.random.normal(ks[7], (HID_DIM, 1), jnp.float32),
        "src_a_dst": scale * jax.random.normal(ks[8], (HID_DIM, 1), jnp.float32),
        "tgt_W": scale * jax.random.normal(ks[9], (EMB_DIM, HID_DIM), jnp.float32),
        "tgt_a_src": scale * jax.random.normal(ks[10], (HID_DIM, 1), jnp.float32),
        "tgt_a_dst": scale * jax.random.normal(ks[11], (HID_DIM, 1), jnp.float32),
        # Decoders (Linear hidden -> emb_dim)
        "src_dec_W": scale * jax.random.normal(ks[12], (HID_DIM, EMB_DIM), jnp.float32),
        "src_dec_b": jnp.zeros((1, EMB_DIM), jnp.float32),
        "tgt_dec_W": scale * jax.random.normal(ks[13], (HID_DIM, EMB_DIM), jnp.float32),
        "tgt_dec_b": jnp.zeros((1, EMB_DIM), jnp.float32),
        # Discriminator MLP
        "dis_W1": scale * jax.random.normal(ks[14], (HID_DIM, DIS_HID), jnp.float32),
        "dis_b1": jnp.zeros((1, DIS_HID), jnp.float32),
        "dis_W2": scale * jax.random.normal(ks[15], (DIS_HID, 1), jnp.float32),
        "dis_b2": jnp.zeros((1, 1), jnp.float32),
    }

    # One-time weight packing (hoisted out of the per-step path).
    packed_params = pack_gat_params(params)
    packed_params = jax.tree_util.tree_map(
        lambda x: jax.block_until_ready(x) if isinstance(x, jax.Array) else x,
        packed_params)

    outs = gat_model_forward(packed_params, src_emb, src_adj, tgt_emb, tgt_adj,
                             dico, ALPHA, DIS_SMOOTH)
    outs = jax.block_until_ready(outs)

    src_enc, tgt_enc, dis_out, src_re, tgt_re, A1, B1 = outs
    assert src_enc.shape == (SRC_VOCAB, HID_DIM)
    assert tgt_enc.shape == (TGT_VOCAB, HID_DIM)
    assert dis_out.shape == (SRC_VOCAB + TGT_VOCAB,)
    assert src_re.shape == (SRC_VOCAB, EMB_DIM)
    assert tgt_re.shape == (TGT_VOCAB, EMB_DIM)
    assert A1.shape == (N_PAIRS, HID_DIM) and B1.shape == (N_PAIRS, HID_DIM)

    # Loose numerical check vs pure-JAX reference (approx reciprocal used only
    # for the softmax denominator in-kernel; sigmoid is exact).
    refs = _ref_forward(params, src_emb, src_adj, tgt_emb, tgt_adj, dico, ALPHA)
    for name, got, ref in zip(
            ["src_enc", "tgt_enc", "dis_out", "src_re", "tgt_re", "A1", "B1"],
            outs, refs):
        err = float(jnp.max(jnp.abs(got - ref)))
        assert err < 2e-2, f"{name} mismatch, max abs err {err}"

    print("KERNEL_OK")
</pallas_src>

<mosaic_0001>
module attributes {stable_mosaic.version = 11 : i64} {
  func.func @fused_gat_kernel(%arg0: i32, %arg1: memref<1x24x32xf32, #tpu.memory_space<vmem>>, %arg2: memref<1x24x24xf32, #tpu.memory_space<vmem>>, %arg3: memref<1x32x128xf32, #tpu.memory_space<vmem>>, %arg4: memref<1x128x128xf32, #tpu.memory_space<vmem>>, %arg5: memref<1x1x128xf32, #tpu.memory_space<vmem>>, %arg6: memref<8x128xf32, #tpu.memory_space<vmem>>, %arg7: memref<1x24x128xf32, #tpu.memory_space<vmem>>) attributes {dimension_semantics = [#tpu.dimension_semantics<parallel>], iteration_bounds = array<i64: 2>, scalar_prefetch = 0 : i64, scratch_operands = 0 : i64, tpu.core_type = #tpu.core_type<tc>, window_params = [{transform_indices = @transform_0, window_bounds = array<i64: 1, 24, 32>}, {transform_indices = @transform_1, window_bounds = array<i64: 1, 24, 24>}, {transform_indices = @transform_2, window_bounds = array<i64: 1, 32, 128>}, {transform_indices = @transform_3, window_bounds = array<i64: 1, 128, 128>}, {transform_indices = @transform_4, window_bounds = array<i64: 1, 1, 128>}, {pipeline_mode = #tpu.pipeline_mode<synchronous>, transform_indices = @transform_5, window_bounds = array<i64: 8, 128>}, {transform_indices = @transform_6, window_bounds = array<i64: 1, 24, 128>}]} {
    %c0 = arith.constant 0 : index
    %c0_0 = arith.constant 0 : index
    %c0_1 = arith.constant 0 : index
    %0 = vector.load %arg1[%c0, %c0_0, %c0_1] : memref<1x24x32xf32, #tpu.memory_space<vmem>>, vector<1x24x32xf32>
    %1 = vector.shape_cast %0 : vector<1x24x32xf32> to vector<24x32xf32>
    %c0_2 = arith.constant 0 : index
    %c0_3 = arith.constant 0 : index
    %c0_4 = arith.constant 0 : index
    %2 = vector.load %arg2[%c0_2, %c0_3, %c0_4] : memref<1x24x24xf32, #tpu.memory_space<vmem>>, vector<1x24x24xf32>
    %3 = vector.shape_cast %2 : vector<1x24x24xf32> to vector<24x24xf32>
    %c0_5 = arith.constant 0 : index
    %c0_6 = arith.constant 0 : index
    %c0_7 = arith.constant 0 : index
    %4 = vector.load %arg3[%c0_5, %c0_6, %c0_7] : memref<1x32x128xf32, #tpu.memory_space<vmem>>, vector<1x32x128xf32>
    %5 = vector.shape_cast %4 : vector<1x32x128xf32> to vector<32x128xf32>
    %c0_8 = arith.constant 0 : index
    %c0_9 = arith.constant 0 : index
    %c0_10 = arith.constant 0 : index
    %6 = vector.load %arg4[%c0_8, %c0_9, %c0_10] : memref<1x128x128xf32, #tpu.memory_space<vmem>>, vector<1x128x128xf32>
    %7 = vector.shape_cast %6 : vector<1x128x128xf32> to vector<128x128xf32>
    %c0_11 = arith.constant 0 : index
    %c0_12 = arith.constant 0 : index
    %c0_13 = arith.constant 0 : index
    %8 = vector.load %arg5[%c0_11, %c0_12, %c0_13] : memref<1x1x128xf32, #tpu.memory_space<vmem>>, vector<1x1x128xf32>
    %9 = vector.shape_cast %8 : vector<1x1x128xf32> to vector<1x128xf32>
    %c0_14 = arith.constant 0 : index
    %c0_15 = arith.constant 0 : index
    %10 = vector.load %arg6[%c0_14, %c0_15] : memref<8x128xf32, #tpu.memory_space<vmem>>, vector<1x128xf32>
    %c1 = arith.constant 1 : index
    %c0_16 = arith.constant 0 : index
    %11 = vector.load %arg6[%c1, %c0_16] : memref<8x128xf32, #tpu.memory_space<vmem>>, vector<1x128xf32>
    %c2 = arith.constant 2 : index
    %c0_17 = arith.constant 0 : index
    %12 = vector.load %arg6[%c2, %c0_17] : memref<8x128xf32, #tpu.memory_space<vmem>>, vector<1x128xf32>
    %c3 = arith.constant 3 : index
    %c0_18 = arith.constant 0 : index
    %13 = vector.load %arg6[%c3, %c0_18] : memref<8x128xf32, #tpu.memory_space<vmem>>, vector<1x128xf32>
    %cst = arith.constant dense<0.000000e+00> : vector<24x128xf32>
    %14 = tpu.matmul %1, %5, %cst {dimension_numbers = #tpu.dot_dimension_numbers<[1], [0], [0], [1], [0, 0, 1, 1], [], []>} : vector<24x32xf32>, vector<32x128xf32>, vector<24x128xf32> -> vector<24x128xf32>
    %15 = vector.extract_strided_slice %14 {offsets = [0, 16], sizes = [24, 1], strides = [1, 1]} : vector<24x128xf32> to vector<24x1xf32>
    %16 = vector.extract_strided_slice %14 {offsets = [0, 17], sizes = [24, 1], strides = [1, 1]} : vector<24x128xf32> to vector<24x1xf32>
    %17 = tpu.transpose %16, [1, 0] : vector<24x1xf32> -> vector<1x24xf32>
    %18 = vector.broadcast %15 : vector<24x1xf32> to vector<24x24xf32>
    %19 = vector.broadcast %17 : vector<1x24xf32> to vector<24x24xf32>
    %20 = arith.addf %18, %19 : vector<24x24xf32>
    %cst_19 = arith.constant 0.000000e+00 : f32
    %21 = vector.broadcast %cst_19 : f32 to vector<24x24xf32>
    %22 = arith.cmpf ogt, %20, %21 : vector<24x24xf32>
    %cst_20 = arith.constant 2.000000e-01 : f32
    %23 = vector.broadcast %cst_20 : f32 to vector<24x24xf32>
    %24 = arith.mulf %23, %20 : vector<24x24xf32>
    %25 = arith.select %22, %20, %24 : vector<24x24xi1>, vector<24x24xf32>
    %cst_21 = arith.constant 0.000000e+00 : f32
    %26 = vector.broadcast %cst_21 : f32 to vector<24x24xf32>
    %27 = arith.cmpf ogt, %3, %26 : vector<24x24xf32>
    %cst_22 = arith.constant -1.000000e+09 : f32
    %28 = vector.broadcast %cst_22 : f32 to vector<24x24xf32>
    %29 = arith.select %27, %25, %28 : vector<24x24xi1>, vector<24x24xf32>
    %cst_23 = arith.constant dense<0xFF800000> : vector<24xf32>
    %30 = vector.multi_reduction <maximumf>, %29, %cst_23 [1] : vector<24x24xf32> to vector<24xf32>
    %31 = vector.shape_cast %30 : vector<24xf32> to vector<24x1xf32>
    %32 = vector.broadcast %31 : vector<24x1xf32> to vector<24x24xf32>
    %33 = arith.subf %29, %32 : vector<24x24xf32>
    %34 = math.exp %33 : vector<24x24xf32>
    %cst_24 = arith.constant dense<0.000000e+00> : vector<24xf32>
    %35 = vector.multi_reduction <add>, %34, %cst_24 [1] : vector<24x24xf32> to vector<24xf32>
    %36 = vector.shape_cast %35 : vector<24xf32> to vector<24x1xf32>
    %37 = tpu.reciprocal %36 {approx = true} : vector<24x1xf32> -> vector<24x1xf32>
    %38 = vector.broadcast %37 : vector<24x1xf32> to vector<24x24xf32>
    %39 = arith.mulf %34, %38 : vector<24x24xf32>
    %cst_25 = arith.constant dense<0.000000e+00> : vector<24x128xf32>
    %40 = tpu.matmul %39, %14, %cst_25 {dimension_numbers = #tpu.dot_dimension_numbers<[1], [0], [0], [1], [0, 0, 1, 1], [], []>} : vector<24x24xf32>, vector<24x128xf32>, vector<24x128xf32> -> vector<24x128xf32>
    %cst_26 = arith.constant 0.000000e+00 : f32
    %41 = vector.broadcast %cst_26 : f32 to vector<24x128xf32>
    %42 = arith.cmpf ogt, %40, %41 : vector<24x128xf32>
    %43 = math.exp %40 : vector<24x128xf32>
    %cst_27 = arith.constant 1.000000e+00 : f32
    %44 = vector.broadcast %cst_27 : f32 to vector<24x128xf32>
    %45 = arith.subf %43, %44 : vector<24x128xf32>
    %46 = arith.select %42, %40, %45 : vector<24x128xi1>, vector<24x128xf32>
    %cst_28 = arith.constant dense<0.000000e+00> : vector<24x128xf32>
    %47 = tpu.matmul %46, %7, %cst_28 {dimension_numbers = #tpu.dot_dimension_numbers<[1], [0], [0], [1], [0, 0, 1, 1], [], []>} : vector<24x128xf32>, vector<128x128xf32>, vector<24x128xf32> -> vector<24x128xf32>
    %48 = vector.broadcast %9 : vector<1x128xf32> to vector<24x128xf32>
    %49 = arith.addf %47, %48 : vector<24x128xf32>
    %cst_29 = arith.constant 0.000000e+00 : f32
    %50 = vector.broadcast %cst_29 : f32 to vector<24x128xf32>
    %51 = arith.cmpf ogt, %49, %50 : vector<24x128xf32>
    %cst_30 = arith.constant 2.000000e-01 : f32
    %52 = vector.broadcast %cst_30 : f32 to vector<24x128xf32>
    %53 = arith.mulf %52, %49 : vector<24x128xf32>
    %54 = arith.select %51, %49, %53 : vector<24x128xi1>, vector<24x128xf32>
    %55 = vector.broadcast %10 : vector<1x128xf32> to vector<24x128xf32>
    %56 = arith.mulf %54, %55 : vector<24x128xf32>
    %57 = vector.broadcast %11 : vector<1x128xf32> to vector<24x128xf32>
    %58 = arith.addf %56, %57 : vector<24x128xf32>
    %cst_31 = arith.constant dense<0.000000e+00> : vector<24xf32>
    %59 = vector.multi_reduction <add>, %58, %cst_31 [1] : vector<24x128xf32> to vector<24xf32>
    %60 = vector.shape_cast %59 : vector<24xf32> to vector<24x1xf32>
    %cst_32 = arith.constant 0.000000e+00 : f32
    %61 = vector.broadcast %cst_32 : f32 to vector<24x1xf32>
    %62 = arith.subf %61, %60 : vector<24x1xf32>
    %63 = math.exp %62 : vector<24x1xf32>
    %cst_33 = arith.constant 1.000000e+00 : f32
    %64 = vector.broadcast %cst_33 : f32 to vector<24x1xf32>
    %65 = arith.addf %64, %63 : vector<24x1xf32>
    %cst_34 = arith.constant 1.000000e+00 : f32
    %66 = vector.broadcast %cst_34 : f32 to vector<24x1xf32>
    %67 = arith.divf %66, %65 : vector<24x1xf32>
    %68 = vector.broadcast %12 : vector<1x128xf32> to vector<24x128xf32>
    %69 = arith.mulf %49, %68 : vector<24x128xf32>
    %70 = vector.broadcast %67 : vector<24x1xf32> to vector<24x128xf32>
    %71 = vector.broadcast %13 : vector<1x128xf32> to vector<24x128xf32>
    %72 = arith.mulf %70, %71 : vector<24x128xf32>
    %73 = arith.addf %69, %72 : vector<24x128xf32>
    %c0_35 = arith.constant 0 : index
    %c0_36 = arith.constant 0 : index
    %c0_37 = arith.constant 0 : index
    %74 = vector.load %arg7[%c0_35, %c0_36, %c0_37] : memref<1x24x128xf32, #tpu.memory_space<vmem>>, vector<1x24x128xf32>
    %75 = vector.shape_cast %74 : vector<1x24x128xf32> to vector<24x128xf32>
    %76 = vector.shape_cast %73 : vector<24x128xf32> to vector<1x24x128xf32>
    tpu.vector_store %arg7[%c0_35, %c0_36, %c0_37], %76 {strides = array<i32>} : memref<1x24x128xf32, #tpu.memory_space<vmem>>, vector<1x24x128xf32>,
    return
  }
  func.func @transform_0(%arg0: i32) -> (i32, i32, i32) {
    %c0_i32 = arith.constant 0 : i32
    %c0_i32_0 = arith.constant 0 : i32
    %c0_i32_1 = arith.constant 0 : i32
    return %arg0, %c0_i32, %c0_i32_0 : i32, i32, i32
  }
  func.func @transform_1(%arg0: i32) -> (i32, i32, i32) {
    %c0_i32 = arith.constant 0 : i32
    %c0_i32_0 = arith.constant 0 : i32
    %c0_i32_1 = arith.constant 0 : i32
    return %arg0, %c0_i32, %c0_i32_0 : i32, i32, i32
  }
  func.func @transform_2(%arg0: i32) -> (i32, i32, i32) {
    %c0_i32 = arith.constant 0 : i32
    %c0_i32_0 = arith.constant 0 : i32
    %c0_i32_1 = arith.constant 0 : i32
    return %arg0, %c0_i32, %c0_i32_0 : i32, i32, i32
  }
  func.func @transform_3(%arg0: i32) -> (i32, i32, i32) {
    %c0_i32 = arith.constant 0 : i32
    %c0_i32_0 = arith.constant 0 : i32
    %c0_i32_1 = arith.constant 0 : i32
    return %arg0, %c0_i32, %c0_i32_0 : i32, i32, i32
  }
  func.func @transform_4(%arg0: i32) -> (i32, i32, i32) {
    %c0_i32 = arith.constant 0 : i32
    %c0_i32_0 = arith.constant 0 : i32
    %c0_i32_1 = arith.constant 0 : i32
    return %arg0, %c0_i32, %c0_i32_0 : i32, i32, i32
  }
  func.func @transform_5(%arg0: i32) -> (i32, i32) {
    %c0_i32 = arith.constant 0 : i32
    %c0_i32_0 = arith.constant 0 : i32
    %c0_i32_1 = arith.constant 0 : i32
    return %c0_i32, %c0_i32_0 : i32, i32
  }
  func.func @transform_6(%arg0: i32) -> (i32, i32, i32) {
    %c0_i32 = arith.constant 0 : i32
    %c0_i32_0 = arith.constant 0 : i32
    %c0_i32_1 = arith.constant 0 : i32
    return %arg0, %c0_i32, %c0_i32_0 : i32, i32, i32
  }
}

</mosaic_0001>

<llo_original>
// kernel: tpu_custom_call.1
$region0: #{tpu_custom_call.1}
  #allocation0 [shape = 'u32[]', space=smem, size = 0x4, offset = 0x4, fixed_abs, tag = 'smem constant byte address 0x4 - core index']
  #allocation1 [shape = 'u32[72,128]{1,0:T(1,128)}', space=vmem, size = 0x9000, scoped, tag = 'internal scratch']
  %s0 = inlined_call_operand.hbm [shape: f32[2,24,32], index: 0, kind: input, shape index: {}]
  %s1 = inlined_call_operand.hbm [shape: f32[2,24,24], index: 1, kind: input, shape index: {}]
  %s2 = inlined_call_operand.hbm [shape: f32[2,32,128], index: 2, kind: input, shape index: {}]
  %s3 = inlined_call_operand.hbm [shape: f32[2,128,128], index: 3, kind: input, shape index: {}]
  %s4 = inlined_call_operand.vmem [shape: f32[2,1,128], index: 4, kind: input, shape index: {}]
  %s5 = inlined_call_operand.hbm [shape: f32[8,128], index: 5, kind: input, shape index: {}]
  %s6 = inlined_call_operand.hbm [shape: f32[2,24,128], index: 6, kind: output, shape index: {}]
  %s7 = sld [smem:[#allocation0]]
  $region77: #{tpu_custom_call.1} parent=0
    _
  %s9 = ssub.s32 1, %s7
  %s10 = scalar_select 0, %s9, %s7
  $region1: #{tpu_custom_call.1} parent=0
    #allocation2 [shape = 'u8[24576]{0}', space=vmem, size = 0x6000, scoped, tag = 'input window, operand 0']
    #allocation3 [shape = 's32[2]{0}', space=sflag, size = 0x8, scoped, tag = 'scoped memory for tpu_custom_call.1']
    #allocation4 [shape = 's32[2]{0}', space=sflag, size = 0x8, scoped, tag = 'scoped memory for tpu_custom_call.1']
    #allocation5 [shape = 'u8[24576]{0}', space=vmem, size = 0x6000, scoped, tag = 'input window, operand 1']
    #allocation6 [shape = 's32[2]{0}', space=sflag, size = 0x8, scoped, tag = 'scoped memory for tpu_custom_call.1']
    #allocation7 [shape = 'u8[32768]{0}', space=vmem, size = 0x8000, scoped, tag = 'input window, operand 2']
    #allocation8 [shape = 'u8[131072]{0}', space=vmem, size = 0x20000, scoped, tag = 'input window, operand 3']
    #allocation9 [shape = 's32[2]{0}', space=sflag, size = 0x8, scoped, tag = 'scoped memory for tpu_custom_call.1']
    #allocation10 [shape = 'u8[4096]{0}', space=vmem, size = 0x1000, scoped, tag = 'input window, operand 5, single buffered']
    #allocation11 [shape = 'u8[24576]{0}', space=vmem, size = 0x6000, scoped, tag = 'output window, operand 0']
    %11 = vsyncpa [#allocation3], 0
    %s12 = scalar_lea.sflag [#allocation3], 1
    %13 = vsyncpa %s12, 0
    %14 = vsyncpa [#allocation6], 0
    %s15 = scalar_lea.sflag [#allocation6], 1
    %16 = vsyncpa %s15, 0
    %17 = vsyncpa [#allocation9], 0
    %s18 = scalar_lea.sflag [#allocation9], 1
    %19 = vsyncpa %s18, 0
    %20 = vsyncpa [#allocation4], 0
    %s21 = scalar_lea.sflag [#allocation4], 1
    %22 = vsyncpa %s21, 0
    loop: start=0, step=1, limit=4
    $region2: #{tpu_custom_call.1} parent=1 // loop_pre_header
      _
    $region3: #{tpu_custom_call.1} parent=1 // loop_header
      %s24 = sphi 0, %s28
      %p25 = scmp.ge.s32.totalorder %s24, 4
      %s34 = sphi 0, %s36
      %s37 = sphi 0, %s34
      %s38 = sphi 0, %s37
      %s54 = sphi 0, %s38
      %s60 = sphi 0, %s62
      %s63 = sphi 0, %s60
      %s64 = sphi 0, %s63
      %s80 = sphi 0, %s64
      %s86 = sphi 0, %s88
      %s89 = sphi 0, %s86
      %s90 = sphi 0, %s89
      %s106 = sphi 0, %s90
      %s112 = sphi 0, %s114
      %s115 = sphi 0, %s112
      %s116 = sphi 0, %s115
      %s132 = sphi 0, %s116
      %s138 = sphi 0, %s140
      %s141 = sphi 0, %s138
      %s142 = sphi 0, %s141
      %s158 = sphi 0, %s142
      %s162 = sphi 0, %s162
      %s164 = sphi 0, %s162
      %s165 = sphi 0, %s164
      %s179 = sphi 0, %s165
      %s185 = sphi 0, %s187
      %s188 = sphi 0, %s185
      %s189 = sphi 0, %s188
      %s205 = sphi 0, %s189
    $region4: #{tpu_custom_call.1} parent=1 // loop_header_branch
      %27 = sbr.rel (%p25) target = $region8
    $region5: #{tpu_custom_call.1} parent=1 // loop_body
      %s29 = ssub.s32 %s24, 1
      %s30 = ssub.s32 %s24, 2
      %s31 = sadd.s32 %s24, 1
      %s32 = ssub.s32 %s24, %s31
      %p33 = scmp.eq.s32.totalorder %s32, 0
      %s35 = sadd.s32 %s34, 1
      %s36 = scalar_select %p33, %s34, %s35
      %p39 = pneg %p33
      %p40 = scmp.eq.s32.totalorder %s24, 1
      %p41 = por %p39, %p40
      %p42 = scmp.ne.s32.totalorder %s34, %s37
      %p43 = scmp.eq.s32.totalorder %s24, 0
      %p44 = por %p42, %p43
      %p45 = scmp.ne.s32.totalorder %s34, %s37
      %p46 = scmp.eq.s32.totalorder %s29, 1
      %p47 = por %p45, %p46
      %p48 = scmp.ne.s32.totalorder %s37, %s38
      %p49 = scmp.eq.s32.totalorder %s29, 0
      %p50 = por %p48, %p49
      %p51 = scmp.ne.s32.totalorder %s37, %s38
      %p52 = scmp.eq.s32.totalorder %s30, 1
      %p53 = por %p51, %p52
      %p55 = scmp.ne.s32.totalorder %s38, %s54
      %p56 = scmp.eq.s32.totalorder %s30, 0
      %p57 = por %p55, %p56
      %s58 = ssub.s32 %s24, %s31
      %p59 = scmp.eq.s32.totalorder %s58, 0
      %s61 = sadd.s32 %s60, 1
      %s62 = scalar_select %p59, %s60, %s61
      %p65 = pneg %p59
      %p66 = scmp.eq.s32.totalorder %s24, 1
      %p67 = por %p65, %p66
      %p68 = scmp.ne.s32.totalorder %s60, %s63
      %p69 = scmp.eq.s32.totalorder %s24, 0
      %p70 = por %p68, %p69
      %p71 = scmp.ne.s32.totalorder %s60, %s63
      %p72 = scmp.eq.s32.totalorder %s29, 1
      %p73 = por %p71, %p72
      %p74 = scmp.ne.s32.totalorder %s63, %s64
      %p75 = scmp.eq.s32.totalorder %s29, 0
      %p76 = por %p74, %p75
      %p77 = scmp.ne.s32.totalorder %s63, %s64
      %p78 = scmp.eq.s32.totalorder %s30, 1
      %p79 = por %p77, %p78
      %p81 = scmp.ne.s32.totalorder %s64, %s80
      %p82 = scmp.eq.s32.totalorder %s30, 0
      %p83 = por %p81, %p82
      %s84 = ssub.s32 %s24, %s31
      %p85 = scmp.eq.s32.totalorder %s84, 0
      %s87 = sadd.s32 %s86, 1
      %s88 = scalar_select %p85, %s86, %s87
      %p91 = pneg %p85
      %p92 = scmp.eq.s32.totalorder %s24, 1
      %p93 = por %p91, %p92
      %p94 = scmp.ne.s32.totalorder %s86, %s89
      %p95 = scmp.eq.s32.totalorder %s24, 0
      %p96 = por %p94, %p95
      %p97 = scmp.ne.s32.totalorder %s86, %s89
      %p98 = scmp.eq.s32.totalorder %s29, 1
      %p99 = por %p97, %p98
      %p100 = scmp.ne.s32.totalorder %s89, %s90
      %p101 = scmp.eq.s32.totalorder %s29, 0
      %p102 = por %p100, %p101
      %p103 = scmp.ne.s32.totalorder %s89, %s90
      %p104 = scmp.eq.s32.totalorder %s30, 1
      %p105 = por %p103, %p104
      %p107 = scmp.ne.s32.totalorder %s90, %s106
      %p108 = scmp.eq.s32.totalorder %s30, 0
      %p109 = por %p107, %p108
      %s110 = ssub.s32 %s24, %s31
      %p111 = scmp.eq.s32.totalorder %s110, 0
      %s113 = sadd.s32 %s112, 1
      %s114 = scalar_select %p111, %s112, %s113
      %p117 = pneg %p111
      %p118 = scmp.eq.s32.totalorder %s24, 1
      %p119 = por %p117, %p118
      %p120 = scmp.ne.s32.totalorder %s112, %s115
      %p121 = scmp.eq.s32.totalorder %s24, 0
      %p122 = por %p120, %p121
      %p123 = scmp.ne.s32.totalorder %s112, %s115
      %p124 = scmp.eq.s32.totalorder %s29, 1
      %p125 = por %p123, %p124
      %p126 = scmp.ne.s32.totalorder %s115, %s116
      %p127 = scmp.eq.s32.totalorder %s29, 0
      %p128 = por %p126, %p127
      %p129 = scmp.ne.s32.totalorder %s115, %s116
      %p130 = scmp.eq.s32.totalorder %s30, 1
      %p131 = por %p129, %p130
      %p133 = scmp.ne.s32.totalorder %s116, %s132
      %p134 = scmp.eq.s32.totalorder %s30, 0
      %p135 = por %p133, %p134
      %s136 = ssub.s32 %s24, %s31
      %p137 = scmp.eq.s32.totalorder %s136, 0
      %s139 = sadd.s32 %s138, 1
      %s140 = scalar_select %p137, %s138, %s139
      %p143 = pneg %p137
      %p144 = scmp.eq.s32.totalorder %s24, 1
      %p145 = por %p143, %p144
      %p146 = scmp.ne.s32.totalorder %s138, %s141
      %p147 = scmp.eq.s32.totalorder %s24, 0
      %p148 = por %p146, %p147
      %p149 = scmp.ne.s32.totalorder %s138, %s141
      %p150 = scmp.eq.s32.totalorder %s29, 1
      %p151 = por %p149, %p150
      %p152 = scmp.ne.s32.totalorder %s141, %s142
      %p153 = scmp.eq.s32.totalorder %s29, 0
      %p154 = por %p152, %p153
      %p155 = scmp.ne.s32.totalorder %s141, %s142
      %p156 = scmp.eq.s32.totalorder %s30, 1
      %p157 = por %p155, %p156
      %p159 = scmp.ne.s32.totalorder %s142, %s158
      %p160 = scmp.eq.s32.totalorder %s30, 0
      %p161 = por %p159, %p160
      %s163 = sadd.s32 %s162, 1
      %p166 = scmp.eq.s32.totalorder %s24, 1
      %p167 = scmp.ne.s32.totalorder %s162, %s164
      %p168 = scmp.eq.s32.totalorder %s24, 0
      %p169 = por %p167, %p168
      %p170 = scmp.ne.s32.totalorder %s162, %s164
      %p171 = scmp.eq.s32.totalorder %s29, 1
      %p172 = por %p170, %p171
      %p173 = scmp.ne.s32.totalorder %s164, %s165
      %p174 = scmp.eq.s32.totalorder %s29, 0
      %p175 = por %p173, %p174
      %p176 = scmp.ne.s32.totalorder %s164, %s165
      %p177 = scmp.eq.s32.totalorder %s30, 1
      %p178 = por %p176, %p177
      %p180 = scmp.ne.s32.totalorder %s165, %s179
      %p181 = scmp.eq.s32.totalorder %s30, 0
      %p182 = por %p180, %p181
      %s183 = ssub.s32 %s24, %s31
      %p184 = scmp.eq.s32.totalorder %s183, 0
      %s186 = sadd.s32 %s185, 1
      %s187 = scalar_select %p184, %s185, %s186
      %p190 = pneg %p184
      %p191 = scmp.eq.s32.totalorder %s24, 1
      %p192 = por %p190, %p191
      %p193 = scmp.ne.s32.totalorder %s185, %s188
      %p194 = scmp.eq.s32.totalorder %s24, 0
      %p195 = por %p193, %p194
      %p196 = scmp.ne.s32.totalorder %s185, %s188
      %p197 = scmp.eq.s32.totalorder %s29, 1
      %p198 = por %p196, %p197
      %p199 = scmp.ne.s32.totalorder %s188, %s189
      %p200 = scmp.eq.s32.totalorder %s29, 0
      %p201 = por %p199, %p200
      %p202 = scmp.ne.s32.totalorder %s188, %s189
      %p203 = scmp.eq.s32.totalorder %s30, 1
      %p204 = por %p202, %p203
      %p206 = scmp.ne.s32.totalorder %s189, %s205
      %p207 = scmp.eq.s32.totalorder %s30, 0
      %p208 = por %p206, %p207
      %p209 = scmp.le.s32.totalorder 1, %s24
      %p210 = scmp.lt.s32.totalorder %s24, 3
      %p211 = pnand %p209, %p210
      %p212 = pneg %p211
      // Predicated region
      $region9: #{tpu_custom_call.1} parent=5 // pred_check
        _
      $region10: #{tpu_custom_call.1} parent=5 // pred_check_branch
        %214 = sbr.rel (%p211) target = $region12
      $region11: #{tpu_custom_call.1} parent=5 // pred_region
        %s215 = ssub.s32 %s24, 1
        // Predicated region
        $region13: #{tpu_custom_call.1} parent=11 // pred_check
          %p216 = pneg %p175
        $region14: #{tpu_custom_call.1} parent=11 // pred_check_branch
          %218 = sbr.rel (%p216) target = $region16
        $region15: #{tpu_custom_call.1} parent=11 // pred_region
          %220 = vsyncadd [#allocation9], 0
          %s222 = sshll.u32 %s5, 4
          %s223 = int_to_ptr.hbm [resolvable:$true] %s222
          %s224 = sshll.u32 [#allocation10], 4
          %s225 = int_to_ptr.vmem [resolvable:$true] %s224
          %227 = dma.hbm_to_vmem [thread:$0]  %s223, 128, %s225, [#allocation9]
        $region16: #{tpu_custom_call.1} parent=11 // pred_fallthru
          _
      $region12: #{tpu_custom_call.1} parent=5 // pred_fallthru
        _
      %p228 = scmp.lt.s32.totalorder %s24, 2
      // Predicated region
      $region17: #{tpu_custom_call.1} parent=5 // pred_check
        %p229 = pneg %p228
      $region18: #{tpu_custom_call.1} parent=5 // pred_check_branch
        %231 = sbr.rel (%p229) target = $region20
      $region19: #{tpu_custom_call.1} parent=5 // pred_region
        // Predicated region
        $region21: #{tpu_custom_call.1} parent=19 // pred_check
          %p232 = pneg %p44
        $region22: #{tpu_custom_call.1} parent=19 // pred_check_branch
          %234 = sbr.rel (%p232) target = $region24
        $region23: #{tpu_custom_call.1} parent=19 // pred_region
          %s235 = sand.u32 %s34, 1
          %s236 = scalar_lea.sflag [#allocation3], %s235
          %s237 = sand.u32 %s34, 1
          %s238 = smul.addr %s237, 24
          %s239 = scalar_lea.vmem [#allocation2], %s238
          %241 = vsyncadd %s236, 0
          %s242 = smul.addr %s24, 3
          %s243 = smul.addr %s242, 8
          %s244 = scalar_lea.hbm %s0, %s243
          %s245 = sshll.u32 %s244, 4
          %s246 = int_to_ptr.hbm [resolvable:$true] %s245
          %s247 = sshll.u32 %s239, 4
          %s248 = int_to_ptr.vmem [resolvable:$true] %s247
          %253 = dma.hbm_to_vmem [thread:$0]  %s246, 384, %s248, %s236, 128, 128, 8
        $region24: #{tpu_custom_call.1} parent=19 // pred_fallthru
          _
        // Predicated region
        $region25: #{tpu_custom_call.1} parent=19 // pred_check
          %p254 = pneg %p70
        $region26: #{tpu_custom_call.1} parent=19 // pred_check_branch
          %256 = sbr.rel (%p254) target = $region28
        $region27: #{tpu_custom_call.1} parent=19 // pred_region
          %s257 = sand.u32 %s24, 1
          %s258 = scalar_lea.sflag [#allocation6], %s257
          %s259 = sand.u32 %s60, 1
          %s260 = smul.addr %s259, 24
          %s261 = scalar_lea.vmem [#allocation5], %s260
          %263 = vsyncadd %s258, 0
          %s264 = smul.addr %s24, 3
          %s265 = smul.addr %s264, 8
          %s266 = scalar_lea.hbm %s1, %s265
          %s267 = sshll.u32 %s266, 4
          %s268 = int_to_ptr.hbm [resolvable:$true] %s267
          %s269 = sshll.u32 %s261, 4
          %s270 = int_to_ptr.vmem [resolvable:$true] %s269
          %275 = dma.hbm_to_vmem [thread:$0]  %s268, 384, %s270, %s258, 128, 128, 8
        $region28: #{tpu_custom_call.1} parent=19 // pred_fallthru
          _
        // Predicated region
        $region29: #{tpu_custom_call.1} parent=19 // pred_check
          %p276 = pneg %p96
        $region30: #{tpu_custom_call.1} parent=19 // pred_check_branch
          %278 = sbr.rel (%p276) target = $region32
        $region31: #{tpu_custom_call.1} parent=19 // pred_region
          %s279 = sand.u32 %s24, 1
          %s280 = scalar_lea.sflag [#allocation6], %s279
          %s281 = sand.u32 %s86, 1
          %s282 = smul.addr %s281, 32
          %s283 = scalar_lea.vmem [#allocation7], %s282
          %285 = vsyncadd %s280, 0
          %s286 = smul.addr %s24, 4
          %s287 = smul.addr %s286, 8
          %s288 = scalar_lea.hbm %s2, %s287
          %s289 = sshll.u32 %s288, 4
          %s290 = int_to_ptr.hbm [resolvable:$true] %s289
          %s291 = sshll.u32 %s283, 4
          %s292 = int_to_ptr.vmem [resolvable:$true] %s291
          %297 = dma.hbm_to_vmem [thread:$0]  %s290, 512, %s292, %s280, 128, 128, 8
        $region32: #{tpu_custom_call.1} parent=19 // pred_fallthru
          _
        // Predicated region
        $region33: #{tpu_custom_call.1} parent=19 // pred_check
          %p298 = pneg %p122
        $region34: #{tpu_custom_call.1} parent=19 // pred_check_branch
          %300 = sbr.rel (%p298) target = $region36
        $region35: #{tpu_custom_call.1} parent=19 // pred_region
          %s301 = sand.u32 %s24, 1
          %s302 = scalar_lea.sflag [#allocation9], %s301
          %s303 = sand.u32 %s112, 1
          %s304 = smul.addr %s303, 128
          %s305 = scalar_lea.vmem [#allocation8], %s304
          %307 = vsyncadd %s302, 0
          %s308 = smul.addr %s24, 16
          %s309 = smul.addr %s308, 8
          %s310 = scalar_lea.hbm %s3, %s309
          %s311 = sshll.u32 %s310, 4
          %s312 = int_to_ptr.hbm [resolvable:$true] %s311
          %s313 = sshll.u32 %s305, 4
          %s314 = int_to_ptr.vmem [resolvable:$true] %s313
          %319 = dma.hbm_to_vmem [thread:$0]  %s312, 2048, %s314, %s302, 128, 128, 8
        $region36: #{tpu_custom_call.1} parent=19 // pred_fallthru
          _
        // Predicated region
        $region37: #{tpu_custom_call.1} parent=19 // pred_check
          %p320 = pneg %p148
        $region38: #{tpu_custom_call.1} parent=19 // pred_check_branch
          %322 = sbr.rel (%p320) target = $region40
        $region39: #{tpu_custom_call.1} parent=19 // pred_region
          %p323 = scmp.lt.s32.totalorder %s24, 1
          %s324 = scalar_select %p323, %s24, 1
          %s325 = scalar_lea.vmem %s4, %s324
        $region40: #{tpu_custom_call.1} parent=19 // pred_fallthru
          _
      $region20: #{tpu_custom_call.1} parent=5 // pred_fallthru
        _
      %p326 = scmp.le.s32.totalorder 1, %s24
      %p327 = scmp.lt.s32.totalorder %s24, 3
      %p328 = pnand %p326, %p327
      %p329 = pneg %p328
      // Predicated region
      $region41: #{tpu_custom_call.1} parent=5 // pred_check
        _
      $region42: #{tpu_custom_call.1} parent=5 // pred_check_branch
        %331 = sbr.rel (%p328) target = $region44
      $region43: #{tpu_custom_call.1} parent=5 // pred_region
        %s332 = ssub.s32 %s24, 1
        %s333 = sand.u32 %s37, 1
        %s334 = scalar_lea.sflag [#allocation3], %s333
        %s335 = sand.u32 %s37, 1
        %s336 = smul.addr %s335, 24
        %s337 = scalar_lea.vmem [#allocation2], %s336
        // Predicated region
        $region45: #{tpu_custom_call.1} parent=43 // pred_check
          %p338 = pneg %p50
        $region46: #{tpu_custom_call.1} parent=43 // pred_check_branch
          %340 = sbr.rel (%p338) target = $region48
        $region47: #{tpu_custom_call.1} parent=43 // pred_region
          %342 = dma.done %s334, 384
        $region48: #{tpu_custom_call.1} parent=43 // pred_fallthru
          _
        %s343 = sand.u32 %s29, 1
        %s344 = scalar_lea.sflag [#allocation6], %s343
        %s345 = sand.u32 %s63, 1
        %s346 = smul.addr %s345, 24
        %s347 = scalar_lea.vmem [#allocation5], %s346
        // Predicated region
        $region49: #{tpu_custom_call.1} parent=43 // pred_check
          %p348 = pneg %p76
        $region50: #{tpu_custom_call.1} parent=43 // pred_check_branch
          %350 = sbr.rel (%p348) target = $region52
        $region51: #{tpu_custom_call.1} parent=43 // pred_region
          %352 = dma.done %s344, 384
        $region52: #{tpu_custom_call.1} parent=43 // pred_fallthru
          _
        %s353 = sand.u32 %s29, 1
        %s354 = scalar_lea.sflag [#allocation6], %s353
        %s355 = sand.u32 %s89, 1
        %s356 = smul.addr %s355, 32
        %s357 = scalar_lea.vmem [#allocation7], %s356
        // Predicated region
        $region53: #{tpu_custom_call.1} parent=43 // pred_check
          %p358 = pneg %p102
        $region54: #{tpu_custom_call.1} parent=43 // pred_check_branch
          %360 = sbr.rel (%p358) target = $region56
        $region55: #{tpu_custom_call.1} parent=43 // pred_region
          %362 = dma.done %s354, 512
        $region56: #{tpu_custom_call.1} parent=43 // pred_fallthru
          _
        %s363 = sand.u32 %s29, 1
        %s364 = scalar_lea.sflag [#allocation9], %s363
        %s365 = sand.u32 %s115, 1
        %s366 = smul.addr %s365, 128
        %s367 = scalar_lea.vmem [#allocation8], %s366
        // Predicated region
        $region57: #{tpu_custom_call.1} parent=43 // pred_check
          %p368 = pneg %p128
        $region58: #{tpu_custom_call.1} parent=43 // pred_check_branch
          %370 = sbr.rel (%p368) target = $region60
        $region59: #{tpu_custom_call.1} parent=43 // pred_region
          %372 = dma.done %s364, 2048
        $region60: #{tpu_custom_call.1} parent=43 // pred_fallthru
          _
        // Predicated region
        $region61: #{tpu_custom_call.1} parent=43 // pred_check
          %p373 = pneg %p175
        $region62: #{tpu_custom_call.1} parent=43 // pred_check_branch
          %375 = sbr.rel (%p373) target = $region64
        $region63: #{tpu_custom_call.1} parent=43 // pred_region
          %377 = dma.done [#allocation9], 128
        $region64: #{tpu_custom_call.1} parent=43 // pred_fallthru
          _
        %s378 = sand.u32 %s37, 1
        %s379 = scalar_lea.sflag [#allocation3], %s378
        %s380 = sand.u32 %s37, 1
        %s381 = smul.addr %s380, 24
        %s382 = scalar_lea.vmem [#allocation2], %s381
        %p383 = pneg %p50
        %p384 = pneg %p47
        %s385 = sand.u32 %s29, 1
        %s386 = scalar_lea.sflag [#allocation6], %s385
        %s387 = sand.u32 %s63, 1
        %s388 = smul.addr %s387, 24
        %s389 = scalar_lea.vmem [#allocation5], %s388
        %p390 = pneg %p76
        %p391 = pneg %p73
        %s392 = sand.u32 %s29, 1
        %s393 = scalar_lea.sflag [#allocation6], %s392
        %s394 = sand.u32 %s89, 1
        %s395 = smul.addr %s394, 32
        %s396 = scalar_lea.vmem [#allocation7], %s395
        %p397 = pneg %p102
        %p398 = pneg %p99
        %s399 = sand.u32 %s29, 1
        %s400 = scalar_lea.sflag [#allocation9], %s399
        %s401 = sand.u32 %s115, 1
        %s402 = smul.addr %s401, 128
        %s403 = scalar_lea.vmem [#allocation8], %s402
        %p404 = pneg %p128
        %p405 = pneg %p125
        %p406 = scmp.lt.s32.totalorder %s29, 1
        %s407 = scalar_select %p406, %s29, 1
        %s408 = scalar_lea.vmem %s4, %s407
        %p409 = pneg %p154
        %p410 = pneg %p151
        %p411 = pneg %p175
        %p412 = pneg %p172
        %p413 = pneg %p201
        %p414 = pneg %p198
        %s415 = sand.u32 %s188, 1
        %s416 = scalar_lea.sflag [#allocation4], %s415
        %s417 = sand.u32 %s188, 1
        %s418 = smul.addr %s417, 24
        %s419 = scalar_lea.vmem [#allocation11], %s418
        %p420 = scmp.lt.s32.totalorder %s29, 1
        %s421 = scalar_select %p420, %s29, 1
        %s422 = scalar_lea.vmem %s4, %s421
        %v423 = vld [vmem:[%s337] sm:$0xff]
        %v424 = vld [vmem:[%s337 + $0x8] sm:$0xff]
        %v425 = vld [vmem:[%s337 + $0x10] sm:$0xff]
        %v426 = vld [vmem:[%s347] sm:$0xff]
        %v427 = vld [vmem:[%s347 + $0x8] sm:$0xff]
        %v428 = vld [vmem:[%s347 + $0x10] sm:$0xff]
        %v429 = vld [vmem:[%s357] sm:$0xff]
        %v430 = vld [vmem:[%s357 + $0x8] sm:$0xff]
        %v431 = vld [vmem:[%s357 + $0x10] sm:$0xff]
        %v432 = vld [vmem:[%s357 + $0x18] sm:$0xff]
        %v433 = vld [vmem:[%s367] sm:$0xff]
        %v434 = vld [vmem:[%s367 + $0x8] sm:$0xff]
        %v435 = vld [vmem:[%s367 + $0x10] sm:$0xff]
        %v436 = vld [vmem:[%s367 + $0x18] sm:$0xff]
        %v437 = vld [vmem:[%s367 + $0x20] sm:$0xff]
        %v438 = vld [vmem:[%s367 + $0x28] sm:$0xff]
        %v439 = vld [vmem:[%s367 + $0x30] sm:$0xff]
        %v440 = vld [vmem:[%s367 + $0x38] sm:$0xff]
        %v441 = vld [vmem:[%s367 + $0x40] sm:$0xff]
        %v442 = vld [vmem:[%s367 + $0x48] sm:$0xff]
        %v443 = vld [vmem:[%s367 + $0x50] sm:$0xff]
        %v444 = vld [vmem:[%s367 + $0x58] sm:$0xff]
        %v445 = vld [vmem:[%s367 + $0x60] sm:$0xff]
        %v446 = vld [vmem:[%s367 + $0x68] sm:$0xff]
        %v447 = vld [vmem:[%s367 + $0x70] sm:$0xff]
        %v448 = vld [vmem:[%s367 + $0x78] sm:$0xff]
        %v449 = vld [vmem:[%s422] sm:$0x1]
        %v450 = vld [vmem:[#allocation10] sm:$0x1]
        %v451 = vld [vmem:[#allocation10 + $0x1] sm:$0x1]
        %v452 = vld [vmem:[#allocation10 + $0x2] sm:$0x1]
        %v453 = vld [vmem:[#allocation10 + $0x3] sm:$0x1]
        %vm454 = vcmask 261120
        %v456 = vsel %vm454, %v423, 0
        %v459 = vsel %vm454, %v424, 0
        %v462 = vsel %vm454, %v425, 0
        %464 = vmatpush.msra.mxu0 0.0
        %465 = vmatpush.msra.mxu0 0.0
        %466 = vmatpush.msra.mxu0 0.0
        %467 = vmatpush.msra.mxu0 0.0
        %468 = vmatpush.msra.mxu0 0.0
        %469 = vmatpush.msra.mxu0 0.0
        %470 = vmatpush.msra.mxu0 0.0
        %471 = vmatpush.msra.mxu0 0.0
        %472 = vmatpush.msra.mxu0 0.0
        %473 = vmatpush.msra.mxu0 0.0
        %474 = vmatpush.msra.mxu0 0.0
        %475 = vmatpush.msra.mxu0 0.0
        %476 = vmatpush.msra.mxu0 %v432
        %477 = vmatpush.msra.mxu0 %v431
        %478 = vmatpush.msra.mxu0 %v430
        %479 = vmatpush.msra.mxu0 %v429
        %480 = vmatmul.f32.gmra.mxu0 %v456
        %v481 = vpop.f32.mrf.mxu0
        %v482 = vadd.f32 0.0, %v481
        %483 = vmatmul.f32.gmra.mxu0 %v459
        %v484 = vpop.f32.mrf.mxu0
        %v485 = vadd.f32 0.0, %v484
        %486 = vmatmul.f32.gmra.mxu0 %v462
        %v487 = vpop.f32.mrf.mxu0
        %v488 = vadd.f32 0.0, %v487
        %489 = vdwg.mxu0
        %493 = vrot.lane.b32.xlu0 %v482, 111
        %v494 = vpop.permute.xlu0 %493
        %495 = vrot.lane.b32.xlu0 %v485, 111
        %v496 = vpop.permute.xlu0 %495
        %497 = vrot.lane.b32.xlu0 %v488, 111
        %v498 = vpop.permute.xlu0 %497
        %502 = vxpose.xlu0.b32.start [1/16] %v494, 128
        %503 = vxpose.xlu0.b32.cont [2/16] %v496, 128
        %504 = vxpose.xlu0.b32.cont [3/16] %v498, 128
        %505 = vxpose.xlu0.b32.cont [4/16] 0.0, 128
        %506 = vxpose.xlu0.b32.cont [5/16] 0.0, 128
        %507 = vxpose.xlu0.b32.cont [6/16] 0.0, 128
        %508 = vxpose.xlu0.b32.cont [7/16] 0.0, 128
        %509 = vxpose.xlu0.b32.cont [8/16] 0.0, 128
        %510 = vxpose.xlu0.b32.cont [9/16] 0.0, 128
        %511 = vxpose.xlu0.b32.cont [10/16] 0.0, 128
        %512 = vxpose.xlu0.b32.cont [11/16] 0.0, 128
        %513 = vxpose.xlu0.b32.cont [12/16] 0.0, 128
        %514 = vxpose.xlu0.b32.cont [13/16] 0.0, 128
        %515 = vxpose.xlu0.b32.cont [14/16] 0.0, 128
        %516 = vxpose.xlu0.b32.cont [15/16] 0.0, 128
        %517 = vxpose.xlu0.b32.end [16/16] 0.0, 128
        %v518 = vpop.trf.xlu0
        %v519 = vpop.trf.xlu0
        %v520 = vpop.trf.xlu0
        %v521 = vpop.trf.xlu0
        %v522 = vpop.trf.xlu0
        %v523 = vpop.trf.xlu0
        %v524 = vpop.trf.xlu0
        %v525 = vpop.trf.xlu0
        %v526 = vpop.trf.xlu0
        %v527 = vpop.trf.xlu0
        %v528 = vpop.trf.xlu0
        %v529 = vpop.trf.xlu0
        %v530 = vpop.trf.xlu0
        %v531 = vpop.trf.xlu0
        %v532 = vpop.trf.xlu0
        %v533 = vpop.trf.xlu0
        %534 = vset.pattern.permute.xlu0 16
        %535 = vperm.xlu0 %534, %v482
        %v536 = vpop.permute.xlu0 %535
        %538 = vset.pattern.permute.xlu0 16
        %539 = vperm.xlu0 %538, %v485
        %v540 = vpop.permute.xlu0 %539
        %542 = vset.pattern.permute.xlu0 16
        %543 = vperm.xlu0 %542, %v488
        %v544 = vpop.permute.xlu0 %543
        %v546 = vperm.slane %v518, 0
        %v547 = vadd.f32 %v536, %v546
        %v548 = vadd.f32 %v540, %v546
        %v549 = vadd.f32 %v544, %v546
        %vm550 = vcmp.gt.f32.partialorder %v547, 0.0
        %vm551 = vcmp.gt.f32.partialorder %v548, 0.0
        %vm552 = vcmp.gt.f32.partialorder %v549, 0.0
        %v553 = vmul.f32 %v547, 0.2
        %v554 = vmul.f32 %v548, 0.2
        %v555 = vmul.f32 %v549, 0.2
        %v556 = vsel %vm550, %v547, %v553
        %v557 = vsel %vm551, %v548, %v554
        %v558 = vsel %vm552, %v549, %v555
        %vm559 = vcmp.gt.f32.partialorder %v426, 0.0
        %vm560 = vcmp.gt.f32.partialorder %v427, 0.0
        %vm561 = vcmp.gt.f32.partialorder %v428, 0.0
        %v562 = vsel %vm559, %v556, -1e+09
        %v563 = vsel %vm560, %v557, -1e+09
        %v564 = vsel %vm561, %v558, -1e+09
        %vm565 = vcmask 195584
        %v566 = vsel %vm565, %v562, -inf
        %567 = vmax.xlane.f32.xlu0 %v566
        %v568 = vpop.xlane.xlu0 %567
        %v569 = vsel %vm565, %v563, -inf
        %570 = vmax.xlane.f32.xlu0 %v569
        %v571 = vpop.xlane.xlu0 %570
        %v572 = vsel %vm565, %v564, -inf
        %573 = vmax.xlane.f32.xlu0 %v572
        %v574 = vpop.xlane.xlu0 %573
        %v575 = vsub.f32 %v562, %v568
        %v576 = vsub.f32 %v563, %v571
        %v577 = vsub.f32 %v564, %v574
        %v578 = vmul.f32 %v575, 1.442695
        %v579 = vpow.pop %v578
        %v580 = vmul.f32 %v576, 1.442695
        %v581 = vpow.pop %v580
        %v582 = vmul.f32 %v577, 1.442695
        %v583 = vpow.pop %v582
        %v584 = vsel %vm565, %v579, 0.0
        %585 = vadd.xlane.f32.xlu0 %v584
        %v586 = vpop.xlane.xlu0 %585
        %v587 = vsel %vm565, %v581, 0.0
        %588 = vadd.xlane.f32.xlu0 %v587
        %v589 = vpop.xlane.xlu0 %588
        %v590 = vsel %vm565, %v583, 0.0
        %591 = vadd.xlane.f32.xlu0 %v590
        %v592 = vpop.xlane.xlu0 %591
        %v593 = vrcp.pop %v586
        %v594 = vrcp.pop %v589
        %v595 = vrcp.pop %v592
        %v596 = vmul.f32 %v579, %v593
        %v597 = vmul.f32 %v581, %v594
        %v598 = vmul.f32 %v583, %v595
        %v600 = vsel %vm565, %v596, 0
        %v603 = vsel %vm565, %v597, 0
        %v606 = vsel %vm565, %v598, 0
        %608 = vmatpush.msra.mxu0 0.0
        %609 = vmatpush.msra.mxu0 0.0
        %610 = vmatpush.msra.mxu0 0.0
        %611 = vmatpush.msra.mxu0 0.0
        %612 = vmatpush.msra.mxu0 0.0
        %613 = vmatpush.msra.mxu0 0.0
        %614 = vmatpush.msra.mxu0 0.0
        %615 = vmatpush.msra.mxu0 0.0
        %616 = vmatpush.msra.mxu0 0.0
        %617 = vmatpush.msra.mxu0 0.0
        %618 = vmatpush.msra.mxu0 0.0
        %619 = vmatpush.msra.mxu0 0.0
        %620 = vmatpush.msra.mxu0 0.0
        %621 = vmatpush.msra.mxu0 %v488
        %622 = vmatpush.msra.mxu0 %v485
        %623 = vmatpush.msra.mxu0 %v482
        %624 = vmatmul.f32.gmra.mxu0 %v600
        %v625 = vpop.f32.mrf.mxu0
        %v626 = vadd.f32 0.0, %v625
        %627 = vmatmul.f32.gmra.mxu0 %v603
        %v628 = vpop.f32.mrf.mxu0
        %v629 = vadd.f32 0.0, %v628
        %630 = vmatmul.f32.gmra.mxu0 %v606
        %v631 = vpop.f32.mrf.mxu0
        %v632 = vadd.f32 0.0, %v631
        %633 = vdwg.mxu0
        %vm634 = vcmp.gt.f32.partialorder %v626, 0.0
        %vm635 = vcmp.gt.f32.partialorder %v629, 0.0
        %vm636 = vcmp.gt.f32.partialorder %v632, 0.0
        %v637 = vmul.f32 %v626, 1.442695
        %v638 = vpow.pop %v637
        %v639 = vmul.f32 %v629, 1.442695
        %v640 = vpow.pop %v639
        %v641 = vmul.f32 %v632, 1.442695
        %v642 = vpow.pop %v641
        %v643 = vsub.f32 %v638, 1.0
        %v644 = vsub.f32 %v640, 1.0
        %v645 = vsub.f32 %v642, 1.0
        %v646 = vsel %vm634, %v626, %v643
        %v647 = vsel %vm635, %v629, %v644
        %v648 = vsel %vm636, %v632, %v645
        %v650 = vperm.slane %v449, 0
        %652 = vmatpush.msra.mxu0 %v448
        %653 = vmatpush.msra.mxu0 %v447
        %654 = vmatpush.msra.mxu0 %v446
        %655 = vmatpush.msra.mxu0 %v445
        %656 = vmatpush.msra.mxu0 %v444
        %657 = vmatpush.msra.mxu0 %v443
        %658 = vmatpush.msra.mxu0 %v442
        %659 = vmatpush.msra.mxu0 %v441
        %660 = vmatpush.msra.mxu0 %v440
        %661 = vmatpush.msra.mxu0 %v439
        %662 = vmatpush.msra.mxu0 %v438
        %663 = vmatpush.msra.mxu0 %v437
        %664 = vmatpush.msra.mxu0 %v436
        %665 = vmatpush.msra.mxu0 %v435
        %666 = vmatpush.msra.mxu0 %v434
        %667 = vmatpush.msra.mxu0 %v433
        %668 = vmatmul.f32.gmra.mxu0 %v646
        %v669 = vpop.f32.mrf.mxu0
        %v670 = vadd.f32 %v650, %v669
        %671 = vmatmul.f32.gmra.mxu0 %v647
        %v672 = vpop.f32.mrf.mxu0
        %v673 = vadd.f32 %v650, %v672
        %674 = vmatmul.f32.gmra.mxu0 %v648
        %v675 = vpop.f32.mrf.mxu0
        %v676 = vadd.f32 %v650, %v675
        %677 = vdwg.mxu0
        %vm678 = vcmp.gt.f32.partialorder %v670, 0.0
        %vm679 = vcmp.gt.f32.partialorder %v673, 0.0
        %vm680 = vcmp.gt.f32.partialorder %v676, 0.0
        %v681 = vmul.f32 %v670, 0.2
        %v682 = vmul.f32 %v673, 0.2
        %v683 = vmul.f32 %v676, 0.2
        %v684 = vsel %vm678, %v670, %v681
        %v685 = vsel %vm679, %v673, %v682
        %v686 = vsel %vm680, %v676, %v683
        %v687 = vperm.slane %v450, 0
        %v688 = vmul.f32 %v684, %v687
        %v689 = vmul.f32 %v685, %v687
        %v690 = vmul.f32 %v686, %v687
        %v691 = vperm.slane %v451, 0
        %v692 = vadd.f32 %v688, %v691
        %v693 = vadd.f32 %v689, %v691
        %v694 = vadd.f32 %v690, %v691
        %695 = vadd.xlane.f32.xlu0 %v692
        %v696 = vpop.xlane.xlu0 %695
        %697 = vadd.xlane.f32.xlu0 %v693
        %v698 = vpop.xlane.xlu0 %697
        %699 = vadd.xlane.f32.xlu0 %v694
        %v700 = vpop.xlane.xlu0 %699
        %v701 = vsub.f32 0.0, %v696
        %v702 = vsub.f32 0.0, %v698
        %v703 = vsub.f32 0.0, %v700
        %v704 = vmul.f32 %v701, 1.442695
        %v705 = vpow.pop %v704
        %v706 = vmul.f32 %v702, 1.442695
        %v707 = vpow.pop %v706
        %v708 = vmul.f32 %v703, 1.442695
        %v709 = vpow.pop %v708
        %v710 = vadd.f32 %v705, 1.0
        %v711 = vadd.f32 %v707, 1.0
        %v712 = vadd.f32 %v709, 1.0
        %v713 = vrcp.pop %v710
        %v714 = vmul.f32 %v710, %v713
        %v715 = vsub.f32 1.0, %v714
        %v716 = vmul.f32 %v713, %v715
        %v717 = vadd.f32 %v713, %v716
        %vm718 = vweird.f32 %v710
        %vm719 = vweird.f32 %v713
        %vm720 = vmor %vm718, %vm719
        %v721 = vsel %vm720, %v713, %v717
        %v722 = vand.u32 2147483647, %v710
        %vm723 = vcmp.eq.f32.partialorder %v722, 8.507059e+37
        %v724 = vand.u32 %v710, 2147483648
        %v725 = vor.u32 1.1754944e-38, %v724
        %v726 = vsel %vm723, %v725, %v721
        %v727 = vmul.f32 1.0, %v726
        %v728 = vrcp.pop %v711
        %v729 = vmul.f32 %v711, %v728
        %v730 = vsub.f32 1.0, %v729
        %v731 = vmul.f32 %v728, %v730
        %v732 = vadd.f32 %v728, %v731
        %vm733 = vweird.f32 %v711
        %vm734 = vweird.f32 %v728
        %vm735 = vmor %vm733, %vm734
        %v736 = vsel %vm735, %v728, %v732
        %v737 = vand.u32 2147483647, %v711
        %vm738 = vcmp.eq.f32.partialorder %v737, 8.507059e+37
        %v739 = vand.u32 %v711, 2147483648
        %v740 = vor.u32 1.1754944e-38, %v739
        %v741 = vsel %vm738, %v740, %v736
        %v742 = vmul.f32 1.0, %v741
        %v743 = vrcp.pop %v712
        %v744 = vmul.f32 %v712, %v743
        %v745 = vsub.f32 1.0, %v744
        %v746 = vmul.f32 %v743, %v745
        %v747 = vadd.f32 %v743, %v746
        %vm748 = vweird.f32 %v712
        %vm749 = vweird.f32 %v743
        %vm750 = vmor %vm748, %vm749
        %v751 = vsel %vm750, %v743, %v747
        %v752 = vand.u32 2147483647, %v712
        %vm753 = vcmp.eq.f32.partialorder %v752, 8.507059e+37
        %v754 = vand.u32 %v712, 2147483648
        %v755 = vor.u32 1.1754944e-38, %v754
        %v756 = vsel %vm753, %v755, %v751
        %v757 = vmul.f32 1.0, %v756
        %v758 = vperm.slane %v452, 0
        %v759 = vmul.f32 %v670, %v758
        %v760 = vmul.f32 %v673, %v758
        %v761 = vmul.f32 %v676, %v758
        %v762 = vperm.slane %v453, 0
        %v763 = vmul.f32 %v727, %v762
        %v764 = vmul.f32 %v742, %v762
        %v765 = vmul.f32 %v757, %v762
        %v766 = vadd.f32 %v759, %v763
        %v767 = vadd.f32 %v760, %v764
        %v768 = vadd.f32 %v761, %v765
        %769 = vst [vmem:[%s419] sm:$0xff] %v766
        %770 = vst [vmem:[%s419 + $0x8] sm:$0xff] %v767
        %771 = vst [vmem:[%s419 + $0x10] sm:$0xff] %v768
        %s772 = sand.u32 %s188, 1
        %s773 = scalar_lea.sflag [#allocation4], %s772
        %s774 = sand.u32 %s188, 1
        %s775 = smul.addr %s774, 24
        %s776 = scalar_lea.vmem [#allocation11], %s775
        // Predicated region
        $region65: #{tpu_custom_call.1} parent=43 // pred_check
          %p777 = pneg %p198
        $region66: #{tpu_custom_call.1} parent=43 // pred_check_branch
          %779 = sbr.rel (%p777) target = $region68
        $region67: #{tpu_custom_call.1} parent=43 // pred_region
          %781 = vsyncadd %s773, 0
          %s782 = smul.addr %s29, 3
          %s783 = smul.addr %s782, 8
          %s784 = scalar_lea.hbm %s6, %s783
          %s785 = sshll.u32 %s776, 4
          %s786 = int_to_ptr.vmem [resolvable:$true] %s785
          %s787 = sshll.u32 %s784, 4
          %s788 = int_to_ptr.hbm [resolvable:$true] %s787
          %793 = dma.vmem_to_hbm [thread:$0]  %s786, 384, %s788, %s773, 128, 128, 8
        $region68: #{tpu_custom_call.1} parent=43 // pred_fallthru
          _
      $region44: #{tpu_custom_call.1} parent=5 // pred_fallthru
        _
      %p794 = scmp.le.s32.totalorder 2, %s24
      // Predicated region
      $region69: #{tpu_custom_call.1} parent=5 // pred_check
        %p795 = pneg %p794
      $region70: #{tpu_custom_call.1} parent=5 // pred_check_branch
        %797 = sbr.rel (%p795) target = $region72
      $region71: #{tpu_custom_call.1} parent=5 // pred_region
        %s798 = ssub.s32 %s24, 2
        // Predicated region
        $region73: #{tpu_custom_call.1} parent=71 // pred_check
          %p799 = pneg %p204
        $region74: #{tpu_custom_call.1} parent=71 // pred_check_branch
          %801 = sbr.rel (%p799) target = $region76
        $region75: #{tpu_custom_call.1} parent=71 // pred_region
          %s802 = sand.u32 %s189, 1
          %s803 = scalar_lea.sflag [#allocation4], %s802
          %s804 = sand.u32 %s189, 1
          %s805 = smul.addr %s804, 24
          %s806 = scalar_lea.vmem [#allocation11], %s805
          %808 = dma.done %s803, 384
        $region76: #{tpu_custom_call.1} parent=71 // pred_fallthru
          _
      $region72: #{tpu_custom_call.1} parent=5 // pred_fallthru
        _
    $region6: #{tpu_custom_call.1} parent=1 // loop_footer
      %s28 = sadd.s32 1, %s24
    $region7: #{tpu_custom_call.1} parent=1 // loop_footer_branch
      %23 = sbr.rel target = $region3
    $region8: #{tpu_custom_call.1} parent=1 // loop_exit
      _
    %809 = vsyncpa [#allocation3], 1
    %s810 = scalar_lea.sflag [#allocation3], 1
    %811 = vsyncpa %s810, 1
    %812 = vsyncpa [#allocation6], 1
    %s813 = scalar_lea.sflag [#allocation6], 1
    %814 = vsyncpa %s813, 1
    %815 = vsyncpa [#allocation9], 1
    %s816 = scalar_lea.sflag [#allocation9], 1
    %817 = vsyncpa %s816, 1
    %818 = vsyncpa [#allocation4], 1
    %s819 = scalar_lea.sflag [#allocation4], 1
    %820 = vsyncpa %s819, 1

</llo_original>
